<compile_context>
chip_gen: v7x
topology: tpu7x:2x2x1
jax: 0.10.0
libtpu: 0.0.40
codegen_flags: <defaults>
</compile_context>

<pallas_src>
import jax
import jax.numpy as jnp
from jax import lax
from jax.experimental import pallas as pl
from jax.experimental.pallas import tpu as pltpu


def _round_up(x, m):
    return ((x + m - 1) // m) * m


def kg_score_kernel(ids_ref, ent_t_ref, rel_t_ref, o_ref):
    """Scores one lane-tile of triples.

    ids_ref:   (3, tile_b)  int32   head / relation / tail ids (batch on lanes)
    ent_t_ref: (D, E)       float32 full entity table, transposed (resident)
    rel_t_ref: (D, R)       float32 full relation table, transposed (resident)
    o_ref:     (1, tile_b)  float32 ||h + r - t||_2 per triple (lane-dense)
    """
    ids = ids_ref[...]
    ent_t = ent_t_ref[...]
    rel_t = rel_t_ref[...]
    tile_b = ids.shape[1]

    def gather_t(table_t, row_ids):
        # table_t: (D, V); row_ids: (1, tile_b).
        # Build a (V, tile_b) one-hot on the VPU, gather via MXU matmul:
        #   (D, V) @ (V, tile_b) -> (D, tile_b).
        # Exact: one-hot entries are 0/1 in f32, so each output element is a
        # single table value (f32 adds of zeros are exact).
        v = table_t.shape[1]
        onehot = lax.broadcasted_iota(jnp.int32, (v, tile_b), 0) == row_ids
        return jnp.dot(table_t, onehot.astype(table_t.dtype),
                       preferred_element_type=jnp.float32)

    h = gather_t(ent_t, ids[0:1, :])
    r = gather_t(rel_t, ids[1:2, :])
    t = gather_t(ent_t, ids[2:3, :])

    diff = h + r - t                                    # (D, tile_b)
    # Sublane reduction over D -> lane-dense (1, tile_b) output slab.
    o_ref[...] = jnp.sqrt(jnp.sum(diff * diff, axis=0, keepdims=True))


def transe_scores_pallas(triples, ent_t, rel_t, *, tile_b=1024):
    """triples: (N, 3) int; ent_t: (D, E) f32; rel_t: (D, R) f32 -> (N,) f32 scores."""
    N = triples.shape[0]
    D, E = ent_t.shape
    D2, R = rel_t.shape
    assert D == D2

    # Batch maps to lanes: tile_b is a multiple of 128, clamped so tiny demo
    # batches don't over-pad while large batches get big tiles.
    tile_b = max(128, min(tile_b, _round_up(N, 128)))
    n_pad = _round_up(N, tile_b)
    grid = (n_pad // tile_b,)

    # (3, N_pad) ids; padded columns use id 0 (valid rows) and are sliced off.
    ids_t = jnp.pad(triples.astype(jnp.int32).T, ((0, 0), (0, n_pad - N)))

    out = pl.pallas_call(
        kg_score_kernel,
        out_shape=jax.ShapeDtypeStruct((1, n_pad), jnp.float32),
        grid=grid,
        in_specs=[
            pl.BlockSpec((3, tile_b), lambda i: (0, i)),
            pl.BlockSpec((D, E), lambda i: (0, 0)),   # constant index -> fetched once
            pl.BlockSpec((D, R), lambda i: (0, 0)),
        ],
        out_specs=pl.BlockSpec((1, tile_b), lambda i: (0, i)),
        compiler_params=pltpu.CompilerParams(
            dimension_semantics=("parallel",)),
    )(ids_t, ent_t, rel_t)
    return out[0, :N]


def xavier_uniform(key, shape):
    fan_in, fan_out = shape[1], shape[0]  # matches torch Embedding weight (num, dim)
    bound = jnp.sqrt(6.0 / (fan_in + fan_out))
    return jax.random.uniform(key, shape, jnp.float32, -bound, bound)


class KGEncoderPallas:
    """Deterministic, parameter-holding wrapper mirroring KGEncoder.forward."""

    def __init__(self, num_entities, num_relations, embedding_dim=32, seed=0):
        self.num_entities = num_entities
        self.num_relations = num_relations
        self.embedding_dim = embedding_dim
        k = jax.random.PRNGKey(seed)
        k_ent, k_rel = jax.random.split(k)
        # nn.Embedding weights with xavier_uniform_ init (deterministic, synthetic).
        self.entity_embeddings = xavier_uniform(k_ent, (num_entities, embedding_dim))
        self.relation_embeddings = xavier_uniform(k_rel, (num_relations, embedding_dim))
        # Pre-transposed copies for the kernel (D on sublanes, vocab on lanes).
        self._entity_t = jnp.asarray(self.entity_embeddings.T, jnp.float32)
        self._relation_t = jnp.asarray(self.relation_embeddings.T, jnp.float32)
        # TODO(synk): the PyTorch module also builds an MLP (Linear-ReLU-Dropout-Linear)
        # that is never used in forward(); intentionally omitted.
        # TODO(synk): the fused one-hot gather assumes the embedding tables fit VMEM;
        # a huge-vocab variant would keep the tables in HBM (memory_space=pl.ANY)
        # and DMA-gather rows driven by prefetched ids instead.

    def forward(self, triples):
        # triples: int32 [N, 3]
        return transe_scores_pallas(triples, self._entity_t, self._relation_t)


if __name__ == "__main__":
    num_entities = 64
    num_relations = 8
    embedding_dim = 32
    n_triples = 16

    enc = KGEncoderPallas(num_entities, num_relations, embedding_dim, seed=0)

    key = jax.random.PRNGKey(0)
    kh, kr, kt = jax.random.split(key, 3)
    triples = jnp.stack(
        [
            jax.random.randint(kh, (n_triples,), 0, num_entities),
            jax.random.randint(kr, (n_triples,), 0, num_relations),
            jax.random.randint(kt, (n_triples,), 0, num_entities),
        ],
        axis=1,
    ).astype(jnp.int32)

    scores = enc.forward(triples)
    scores = jax.block_until_ready(scores)

    # Reference check (plain JAX) for the same forward semantics.
    h = enc.entity_embeddings[triples[:, 0]]
    r = enc.relation_embeddings[triples[:, 1]]
    t = enc.entity_embeddings[triples[:, 2]]
    ref = jnp.linalg.norm(h + r - t, axis=1)
    assert scores.shape == (n_triples,)
    assert jnp.allclose(scores, ref, atol=1e-5, rtol=1e-5), (scores, ref)

    print("KERNEL_OK")
</pallas_src>

<mosaic_0001>
module attributes {stable_mosaic.version = 11 : i64} {
  func.func @kg_score_kernel(%arg0: i32, %arg1: memref<3x128xi32, #tpu.memory_space<vmem>>, %arg2: memref<32x64xf32, #tpu.memory_space<vmem>>, %arg3: memref<32x8xf32, #tpu.memory_space<vmem>>, %arg4: memref<1x128xf32, #tpu.memory_space<vmem>>) attributes {dimension_semantics = [#tpu.dimension_semantics<parallel>], iteration_bounds = array<i64: 1>, scalar_prefetch = 0 : i64, scratch_operands = 0 : i64, tpu.core_type = #tpu.core_type<tc>, window_params = [{transform_indices = @transform_0, window_bounds = array<i64: 3, 128>}, {pipeline_mode = #tpu.pipeline_mode<synchronous>, transform_indices = @transform_1, window_bounds = array<i64: 32, 64>}, {pipeline_mode = #tpu.pipeline_mode<synchronous>, transform_indices = @transform_2, window_bounds = array<i64: 32, 8>}, {transform_indices = @transform_3, window_bounds = array<i64: 1, 128>}]} {
    %c0 = arith.constant 0 : index
    %c0_0 = arith.constant 0 : index
    %0 = vector.load %arg1[%c0, %c0_0] : memref<3x128xi32, #tpu.memory_space<vmem>>, vector<3x128xi32>
    %c0_1 = arith.constant 0 : index
    %c0_2 = arith.constant 0 : index
    %1 = vector.load %arg2[%c0_1, %c0_2] : memref<32x64xf32, #tpu.memory_space<vmem>>, vector<32x64xf32>
    %c0_3 = arith.constant 0 : index
    %c0_4 = arith.constant 0 : index
    %2 = vector.load %arg3[%c0_3, %c0_4] : memref<32x8xf32, #tpu.memory_space<vmem>>, vector<32x8xf32>
    %3 = vector.extract_strided_slice %0 {offsets = [0, 0], sizes = [1, 128], strides = [1, 1]} : vector<3x128xi32> to vector<1x128xi32>
    %4 = tpu.iota {dimensions = array<i32: 0>} : vector<64x128xi32>
    %5 = vector.broadcast %3 : vector<1x128xi32> to vector<64x128xi32>
    %6 = arith.cmpi eq, %4, %5 : vector<64x128xi32>
    %7 = arith.extui %6 : vector<64x128xi1> to vector<64x128xi32>
    %8 = arith.sitofp %7 : vector<64x128xi32> to vector<64x128xf32>
    %cst = arith.constant dense<0.000000e+00> : vector<32x128xf32>
    %9 = tpu.matmul %1, %8, %cst {dimension_numbers = #tpu.dot_dimension_numbers<[1], [0], [0], [1], [0, 0, 1, 1], [], []>} : vector<32x64xf32>, vector<64x128xf32>, vector<32x128xf32> -> vector<32x128xf32>
    %10 = vector.extract_strided_slice %0 {offsets = [1, 0], sizes = [1, 128], strides = [1, 1]} : vector<3x128xi32> to vector<1x128xi32>
    %11 = tpu.iota {dimensions = array<i32: 0>} : vector<8x128xi32>
    %12 = vector.broadcast %10 : vector<1x128xi32> to vector<8x128xi32>
    %13 = arith.cmpi eq, %11, %12 : vector<8x128xi32>
    %14 = arith.extui %13 : vector<8x128xi1> to vector<8x128xi32>
    %15 = arith.sitofp %14 : vector<8x128xi32> to vector<8x128xf32>
    %cst_5 = arith.constant dense<0.000000e+00> : vector<32x128xf32>
    %16 = tpu.matmul %2, %15, %cst_5 {dimension_numbers = #tpu.dot_dimension_numbers<[1], [0], [0], [1], [0, 0, 1, 1], [], []>} : vector<32x8xf32>, vector<8x128xf32>, vector<32x128xf32> -> vector<32x128xf32>
    %17 = vector.extract_strided_slice %0 {offsets = [2, 0], sizes = [1, 128], strides = [1, 1]} : vector<3x128xi32> to vector<1x128xi32>
    %18 = tpu.iota {dimensions = array<i32: 0>} : vector<64x128xi32>
    %19 = vector.broadcast %17 : vector<1x128xi32> to vector<64x128xi32>
    %20 = arith.cmpi eq, %18, %19 : vector<64x128xi32>
    %21 = arith.extui %20 : vector<64x128xi1> to vector<64x128xi32>
    %22 = arith.sitofp %21 : vector<64x128xi32> to vector<64x128xf32>
    %cst_6 = arith.constant dense<0.000000e+00> : vector<32x128xf32>
    %23 = tpu.matmul %1, %22, %cst_6 {dimension_numbers = #tpu.dot_dimension_numbers<[1], [0], [0], [1], [0, 0, 1, 1], [], []>} : vector<32x64xf32>, vector<64x128xf32>, vector<32x128xf32> -> vector<32x128xf32>
    %24 = arith.addf %9, %16 : vector<32x128xf32>
    %25 = arith.subf %24, %23 : vector<32x128xf32>
    %26 = arith.mulf %25, %25 : vector<32x128xf32>
    %cst_7 = arith.constant dense<0.000000e+00> : vector<128xf32>
    %27 = vector.multi_reduction <add>, %26, %cst_7 [0] : vector<32x128xf32> to vector<128xf32>
    %28 = vector.shape_cast %27 : vector<128xf32> to vector<1x128xf32>
    %29 = math.sqrt %28 : vector<1x128xf32>
    %c0_8 = arith.constant 0 : index
    %c0_9 = arith.constant 0 : index
    %30 = vector.load %arg4[%c0_8, %c0_9] : memref<1x128xf32, #tpu.memory_space<vmem>>, vector<1x128xf32>
    tpu.vector_store %arg4[%c0_8, %c0_9], %29 {strides = array<i32>} : memref<1x128xf32, #tpu.memory_space<vmem>>, vector<1x128xf32>,
    return
  }
  func.func @transform_0(%arg0: i32) -> (i32, i32) {
    %c0_i32 = arith.constant 0 : i32
    %c0_i32_0 = arith.constant 0 : i32
    return %c0_i32, %arg0 : i32, i32
  }
  func.func @transform_1(%arg0: i32) -> (i32, i32) {
    %c0_i32 = arith.constant 0 : i32
    %c0_i32_0 = arith.constant 0 : i32
    %c0_i32_1 = arith.constant 0 : i32
    return %c0_i32, %c0_i32_0 : i32, i32
  }
  func.func @transform_2(%arg0: i32) -> (i32, i32) {
    %c0_i32 = arith.constant 0 : i32
    %c0_i32_0 = arith.constant 0 : i32
    %c0_i32_1 = arith.constant 0 : i32
    return %c0_i32, %c0_i32_0 : i32, i32
  }
  func.func @transform_3(%arg0: i32) -> (i32, i32) {
    %c0_i32 = arith.constant 0 : i32
    %c0_i32_0 = arith.constant 0 : i32
    return %c0_i32, %arg0 : i32, i32
  }
}

</mosaic_0001>

<llo_original>
// kernel: tpu_custom_call.1
$region0: #{tpu_custom_call.1}
  #allocation0 [shape = 'u32[]', space=smem, size = 0x4, offset = 0x4, fixed_abs, tag = 'smem constant byte address 0x4 - core index']
  #allocation1 [shape = 'u32[144,128]{1,0:T(1,128)}', space=vmem, size = 0x12000, scoped, tag = 'internal scratch']
  %s0 = inlined_call_operand.vmem [shape: s32[3,128], index: 0, kind: input, shape index: {}]
  %s1 = inlined_call_operand.vmem [shape: f32[32,64], index: 1, kind: input, shape index: {}]
  %s2 = inlined_call_operand.vmem [shape: f32[32,8], index: 2, kind: input, shape index: {}]
  %s3 = inlined_call_operand.hbm [shape: f32[1,128], index: 3, kind: output, shape index: {}]
  %s4 = sld [smem:[#allocation0]]
  $region22: #{tpu_custom_call.1} parent=0
    _
  %s6 = ssub.s32 1, %s4
  %s7 = scalar_select 0, %s6, %s4
  $region1: #{tpu_custom_call.1} parent=0
    #allocation2 [shape = 'u8[512]{0}', space=vmem, size = 0x400, scoped, tag = 'output window, operand 0, single buffered']
    #allocation3 [shape = 's32[1]{0}', space=sflag, size = 0x4, scoped, tag = 'scoped memory for tpu_custom_call.1']
    %8 = vsyncpa [#allocation3], 0
    // Predicated region
    $region2: #{tpu_custom_call.1} parent=1 // pred_check
      _
    $region3: #{tpu_custom_call.1} parent=1 // pred_check_branch
      %10 = sbr.rel (0) target = $region5
    $region4: #{tpu_custom_call.1} parent=1 // pred_region
      _
    $region5: #{tpu_custom_call.1} parent=1 // pred_fallthru
      _
    // Predicated region
    $region6: #{tpu_custom_call.1} parent=1 // pred_check
      _
    $region7: #{tpu_custom_call.1} parent=1 // pred_check_branch
      %12 = sbr.rel (0) target = $region9
    $region8: #{tpu_custom_call.1} parent=1 // pred_region
      _
    $region9: #{tpu_custom_call.1} parent=1 // pred_fallthru
      _
    // Predicated region
    $region10: #{tpu_custom_call.1} parent=1 // pred_check
      _
    $region11: #{tpu_custom_call.1} parent=1 // pred_check_branch
      %14 = sbr.rel (0) target = $region13
    $region12: #{tpu_custom_call.1} parent=1 // pred_region
      _
    $region13: #{tpu_custom_call.1} parent=1 // pred_fallthru
      _
    %v15 = vld [vmem:[%s0] sm:$0x7]
    %v16 = vld [vmem:[%s1] sm:$0xff]
    %v17 = vld [vmem:[%s1 + $0x8] sm:$0xff]
    %v18 = vld [vmem:[%s1 + $0x10] sm:$0xff]
    %v19 = vld [vmem:[%s1 + $0x18] sm:$0xff]
    %v20 = vld [vmem:[%s2] sm:$0xff]
    %v21 = vld [vmem:[%s2 + $0x8] sm:$0xff]
    %v22 = vld [vmem:[%s2 + $0x10] sm:$0xff]
    %v23 = vld [vmem:[%s2 + $0x18] sm:$0xff]
    %v24 = vlaneseq
    %v25 = vshrl.u32 %v24, 7
    %v26 = vadd.s32 %v25, 8
    %v27 = vadd.s32 %v25, 16
    %v28 = vadd.s32 %v25, 24
    %v29 = vadd.s32 %v25, 32
    %v30 = vadd.s32 %v25, 40
    %v31 = vadd.s32 %v25, 48
    %v32 = vadd.s32 %v25, 56
    %v33 = vlaneseq
    %v34 = vshrl.u32 %v33, 7
    %v35 = vsub.s32 0, %v34
    %v36 = vrot.slane %v15, %v35
    %vm37 = vcmp.eq.s32.totalorder %v25, %v36
    %vm38 = vcmp.eq.s32.totalorder %v26, %v36
    %vm39 = vcmp.eq.s32.totalorder %v27, %v36
    %vm40 = vcmp.eq.s32.totalorder %v28, %v36
    %vm41 = vcmp.eq.s32.totalorder %v29, %v36
    %vm42 = vcmp.eq.s32.totalorder %v30, %v36
    %vm43 = vcmp.eq.s32.totalorder %v31, %v36
    %vm44 = vcmp.eq.s32.totalorder %v32, %v36
    %v45 = vsel %vm37, 1, 0
    %v46 = vsel %vm38, 1, 0
    %v47 = vsel %vm39, 1, 0
    %v48 = vsel %vm40, 1, 0
    %v49 = vsel %vm41, 1, 0
    %v50 = vsel %vm42, 1, 0
    %v51 = vsel %vm43, 1, 0
    %v52 = vsel %vm44, 1, 0
    %v53 = vcvt.s32.f32 %v45
    %v54 = vcvt.s32.f32 %v46
    %v55 = vcvt.s32.f32 %v47
    %v56 = vcvt.s32.f32 %v48
    %v57 = vcvt.s32.f32 %v49
    %v58 = vcvt.s32.f32 %v50
    %v59 = vcvt.s32.f32 %v51
    %v60 = vcvt.s32.f32 %v52
    %v61 = vlaneseq
    %v62 = vshrl.u32 %v61, 7
    %v63 = vsub.s32 1, %v62
    %v64 = vrot.slane %v15, %v63
    %vm65 = vcmp.eq.s32.totalorder %v25, %v64
    %v66 = vsel %vm65, 1, 0
    %v67 = vcvt.s32.f32 %v66
    %vm68 = vcmask 64512
    %v70 = vsel %vm68, %v20, 0
    %v73 = vsel %vm68, %v21, 0
    %v76 = vsel %vm68, %v22, 0
    %v79 = vsel %vm68, %v23, 0
    %81 = vmatprep.subr.mxu0 0.0
    %82 = vmatpush1.msra.mxu0 %v67
    %83 = vmatprep.subr.mxu0 0.0
    %84 = vmatpush1.msra.mxu0 0.0
    %85 = vmatprep.subr.mxu0 0.0
    %86 = vmatpush1.msra.mxu0 0.0
    %87 = vmatprep.subr.mxu0 0.0
    %88 = vmatpush1.msra.mxu0 0.0
    %89 = vmatprep.subr.mxu0 0.0
    %90 = vmatpush1.msra.mxu0 0.0
    %91 = vmatprep.subr.mxu0 0.0
    %92 = vmatpush1.msra.mxu0 0.0
    %93 = vmatprep.subr.mxu0 0.0
    %94 = vmatpush1.msra.mxu0 0.0
    %95 = vmatprep.subr.mxu0 0.0
    %96 = vmatpush1.msra.mxu0 0.0
    %97 = vmatprep.subr.mxu0 0.0
    %98 = vmatpush1.msra.mxu0 0.0
    %99 = vmatprep.subr.mxu0 0.0
    %100 = vmatpush1.msra.mxu0 0.0
    %101 = vmatprep.subr.mxu0 0.0
    %102 = vmatpush1.msra.mxu0 0.0
    %103 = vmatprep.subr.mxu0 0.0
    %104 = vmatpush1.msra.mxu0 0.0
    %105 = vmatprep.subr.mxu0 0.0
    %106 = vmatpush1.msra.mxu0 0.0
    %107 = vmatprep.subr.mxu0 0.0
    %108 = vmatpush1.msra.mxu0 0.0
    %109 = vmatprep.subr.mxu0 0.0
    %110 = vmatpush1.msra.mxu0 0.0
    %111 = vmatprep.subr.mxu0 0.0
    %112 = vmatpush1.msra.mxu0 0.0
    %113 = vmatprep.subr.mxu0 0.0
    %114 = vmatpush1.msra.mxu0 0.0
    %115 = vmatprep.subr.mxu0 0.0
    %116 = vmatpush1.msra.mxu0 0.0
    %117 = vmatprep.subr.mxu0 0.0
    %118 = vmatpush1.msra.mxu0 0.0
    %119 = vmatprep.subr.mxu0 0.0
    %120 = vmatpush1.msra.mxu0 0.0
    %121 = vmatprep.subr.mxu0 0.0
    %122 = vmatpush1.msra.mxu0 0.0
    %123 = vmatprep.subr.mxu0 0.0
    %124 = vmatpush1.msra.mxu0 0.0
    %125 = vmatprep.subr.mxu0 0.0
    %126 = vmatpush1.msra.mxu0 0.0
    %127 = vmatprep.subr.mxu0 0.0
    %128 = vmatpush1.msra.mxu0 0.0
    %129 = vmatprep.subr.mxu0 0.0
    %130 = vmatpush1.msra.mxu0 0.0
    %131 = vmatprep.subr.mxu0 0.0
    %132 = vmatpush1.msra.mxu0 0.0
    %133 = vmatprep.subr.mxu0 0.0
    %134 = vmatpush1.msra.mxu0 0.0
    %135 = vmatprep.subr.mxu0 0.0
    %136 = vmatpush1.msra.mxu0 0.0
    %137 = vmatprep.subr.mxu0 0.0
    %138 = vmatpush1.msra.mxu0 0.0
    %139 = vmatprep.subr.mxu0 0.0
    %140 = vmatpush1.msra.mxu0 0.0
    %141 = vmatprep.subr.mxu0 0.0
    %142 = vmatpush1.msra.mxu0 0.0
    %143 = vmatprep.subr.mxu0 0.0
    %144 = vmatpush1.msra.mxu0 0.0
    %145 = vmatprep.mubr.f32.mxu0 0.0
    %146 = vmatmul.mubr.f32.gmra.mrb[0].mxu0 %v70
    %v147 = vpop.f32.mrb[0].mxu0
    %v148 = vadd.f32 0.0, %v147
    %v149 = vpop.f32.mrb[0].mxu0
    %150 = vmatprep.mubr.f32.mxu0 0.0
    %151 = vmatmul.mubr.f32.gmra.mrb[0].mxu0 %v73
    %v152 = vpop.f32.mrb[0].mxu0
    %v153 = vadd.f32 0.0, %v152
    %v154 = vpop.f32.mrb[0].mxu0
    %155 = vmatprep.mubr.f32.mxu0 0.0
    %156 = vmatmul.mubr.f32.gmra.mrb[0].mxu0 %v76
    %v157 = vpop.f32.mrb[0].mxu0
    %v158 = vadd.f32 0.0, %v157
    %v159 = vpop.f32.mrb[0].mxu0
    %160 = vmatprep.mubr.f32.mxu0 0.0
    %161 = vmatmul.mubr.f32.gmra.mrb[0].mxu0 %v79
    %v162 = vpop.f32.mrb[0].mxu0
    %v163 = vadd.f32 0.0, %v162
    %v164 = vpop.f32.mrb[0].mxu0
    %165 = vdwg.mxu0
    %v166 = vlaneseq
    %v167 = vshrl.u32 %v166, 7
    %v168 = vsub.s32 2, %v167
    %v169 = vrot.slane %v15, %v168
    %vm170 = vcmp.eq.s32.totalorder %v25, %v169
    %vm171 = vcmp.eq.s32.totalorder %v26, %v169
    %vm172 = vcmp.eq.s32.totalorder %v27, %v169
    %vm173 = vcmp.eq.s32.totalorder %v28, %v169
    %vm174 = vcmp.eq.s32.totalorder %v29, %v169
    %vm175 = vcmp.eq.s32.totalorder %v30, %v169
    %vm176 = vcmp.eq.s32.totalorder %v31, %v169
    %vm177 = vcmp.eq.s32.totalorder %v32, %v169
    %v178 = vsel %vm170, 1, 0
    %v179 = vsel %vm171, 1, 0
    %v180 = vsel %vm172, 1, 0
    %v181 = vsel %vm173, 1, 0
    %v182 = vsel %vm174, 1, 0
    %v183 = vsel %vm175, 1, 0
    %v184 = vsel %vm176, 1, 0
    %v185 = vsel %vm177, 1, 0
    %v186 = vcvt.s32.f32 %v178
    %v187 = vcvt.s32.f32 %v179
    %v188 = vcvt.s32.f32 %v180
    %v189 = vcvt.s32.f32 %v181
    %v190 = vcvt.s32.f32 %v182
    %v191 = vcvt.s32.f32 %v183
    %v192 = vcvt.s32.f32 %v184
    %v193 = vcvt.s32.f32 %v185
    %vm194 = vcmask 523264
    %v196 = vsel %vm194, %v16, 0
    %v199 = vsel %vm194, %v17, 0
    %v202 = vsel %vm194, %v18, 0
    %v205 = vsel %vm194, %v19, 0
    %207 = vmatprep.subr.mxu0 0.0
    %208 = vmatpush1.msra.mxu0 %v186
    %209 = vmatprep.subr.mxu0 0.0
    %210 = vmatpush1.msra.mxu0 %v187
    %211 = vmatprep.subr.mxu0 0.0
    %212 = vmatpush1.msra.mxu0 %v188
    %213 = vmatprep.subr.mxu0 0.0
    %214 = vmatpush1.msra.mxu0 %v189
    %215 = vmatprep.subr.mxu0 0.0
    %216 = vmatpush1.msra.mxu0 %v190
    %217 = vmatprep.subr.mxu0 0.0
    %218 = vmatpush1.msra.mxu0 %v191
    %219 = vmatprep.subr.mxu0 0.0
    %220 = vmatpush1.msra.mxu0 %v192
    %221 = vmatprep.subr.mxu0 0.0
    %222 = vmatpush1.msra.mxu0 %v193
    %223 = vmatprep.subr.mxu0 0.0
    %224 = vmatpush1.msra.mxu0 0.0
    %225 = vmatprep.subr.mxu0 0.0
    %226 = vmatpush1.msra.mxu0 0.0
    %227 = vmatprep.subr.mxu0 0.0
    %228 = vmatpush1.msra.mxu0 0.0
    %229 = vmatprep.subr.mxu0 0.0
    %230 = vmatpush1.msra.mxu0 0.0
    %231 = vmatprep.subr.mxu0 0.0
    %232 = vmatpush1.msra.mxu0 0.0
    %233 = vmatprep.subr.mxu0 0.0
    %234 = vmatpush1.msra.mxu0 0.0
    %235 = vmatprep.subr.mxu0 0.0
    %236 = vmatpush1.msra.mxu0 0.0
    %237 = vmatprep.subr.mxu0 0.0
    %238 = vmatpush1.msra.mxu0 0.0
    %239 = vmatprep.subr.mxu0 0.0
    %240 = vmatpush1.msra.mxu0 0.0
    %241 = vmatprep.subr.mxu0 0.0
    %242 = vmatpush1.msra.mxu0 0.0
    %243 = vmatprep.subr.mxu0 0.0
    %244 = vmatpush1.msra.mxu0 0.0
    %245 = vmatprep.subr.mxu0 0.0
    %246 = vmatpush1.msra.mxu0 0.0
    %247 = vmatprep.subr.mxu0 0.0
    %248 = vmatpush1.msra.mxu0 0.0
    %249 = vmatprep.subr.mxu0 0.0
    %250 = vmatpush1.msra.mxu0 0.0
    %251 = vmatprep.subr.mxu0 0.0
    %252 = vmatpush1.msra.mxu0 0.0
    %253 = vmatprep.subr.mxu0 0.0
    %254 = vmatpush1.msra.mxu0 0.0
    %255 = vmatprep.subr.mxu0 0.0
    %256 = vmatpush1.msra.mxu0 0.0
    %257 = vmatprep.subr.mxu0 0.0
    %258 = vmatpush1.msra.mxu0 0.0
    %259 = vmatprep.subr.mxu0 0.0
    %260 = vmatpush1.msra.mxu0 0.0
    %261 = vmatprep.subr.mxu0 0.0
    %262 = vmatpush1.msra.mxu0 0.0
    %263 = vmatprep.subr.mxu0 0.0
    %264 = vmatpush1.msra.mxu0 0.0
    %265 = vmatprep.subr.mxu0 0.0
    %266 = vmatpush1.msra.mxu0 0.0
    %267 = vmatprep.subr.mxu0 0.0
    %268 = vmatpush1.msra.mxu0 0.0
    %269 = vmatprep.subr.mxu0 0.0
    %270 = vmatpush1.msra.mxu0 0.0
    %271 = vmatprep.mubr.f32.mxu0 0.0
    %272 = vmatmul.mubr.f32.gmra.mrb[0].mxu0 %v196
    %v273 = vpop.f32.mrb[0].mxu0
    %v274 = vadd.f32 0.0, %v273
    %v275 = vpop.f32.mrb[0].mxu0
    %276 = vmatprep.mubr.f32.mxu0 0.0
    %277 = vmatmul.mubr.f32.gmra.mrb[0].mxu0 %v199
    %v278 = vpop.f32.mrb[0].mxu0
    %v279 = vadd.f32 0.0, %v278
    %v280 = vpop.f32.mrb[0].mxu0
    %281 = vmatprep.mubr.f32.mxu0 0.0
    %282 = vmatmul.mubr.f32.gmra.mrb[0].mxu0 %v202
    %v283 = vpop.f32.mrb[0].mxu0
    %v284 = vadd.f32 0.0, %v283
    %v285 = vpop.f32.mrb[0].mxu0
    %286 = vmatprep.mubr.f32.mxu0 0.0
    %287 = vmatmul.mubr.f32.gmra.mrb[0].mxu0 %v205
    %v288 = vpop.f32.mrb[0].mxu0
    %v289 = vadd.f32 0.0, %v288
    %v290 = vpop.f32.mrb[0].mxu0
    %291 = vdwg.mxu0
    %292 = vmatprep.subr.mxu0 0.0
    %293 = vmatpush1.msra.mxu0 %v53
    %294 = vmatprep.subr.mxu0 0.0
    %295 = vmatpush1.msra.mxu0 %v54
    %296 = vmatprep.subr.mxu0 0.0
    %297 = vmatpush1.msra.mxu0 %v55
    %298 = vmatprep.subr.mxu0 0.0
    %299 = vmatpush1.msra.mxu0 %v56
    %300 = vmatprep.subr.mxu0 0.0
    %301 = vmatpush1.msra.mxu0 %v57
    %302 = vmatprep.subr.mxu0 0.0
    %303 = vmatpush1.msra.mxu0 %v58
    %304 = vmatprep.subr.mxu0 0.0
    %305 = vmatpush1.msra.mxu0 %v59
    %306 = vmatprep.subr.mxu0 0.0
    %307 = vmatpush1.msra.mxu0 %v60
    %308 = vmatprep.subr.mxu0 0.0
    %309 = vmatpush1.msra.mxu0 0.0
    %310 = vmatprep.subr.mxu0 0.0
    %311 = vmatpush1.msra.mxu0 0.0
    %312 = vmatprep.subr.mxu0 0.0
    %313 = vmatpush1.msra.mxu0 0.0
    %314 = vmatprep.subr.mxu0 0.0
    %315 = vmatpush1.msra.mxu0 0.0
    %316 = vmatprep.subr.mxu0 0.0
    %317 = vmatpush1.msra.mxu0 0.0
    %318 = vmatprep.subr.mxu0 0.0
    %319 = vmatpush1.msra.mxu0 0.0
    %320 = vmatprep.subr.mxu0 0.0
    %321 = vmatpush1.msra.mxu0 0.0
    %322 = vmatprep.subr.mxu0 0.0
    %323 = vmatpush1.msra.mxu0 0.0
    %324 = vmatprep.subr.mxu0 0.0
    %325 = vmatpush1.msra.mxu0 0.0
    %326 = vmatprep.subr.mxu0 0.0
    %327 = vmatpush1.msra.mxu0 0.0
    %328 = vmatprep.subr.mxu0 0.0
    %329 = vmatpush1.msra.mxu0 0.0
    %330 = vmatprep.subr.mxu0 0.0
    %331 = vmatpush1.msra.mxu0 0.0
    %332 = vmatprep.subr.mxu0 0.0
    %333 = vmatpush1.msra.mxu0 0.0
    %334 = vmatprep.subr.mxu0 0.0
    %335 = vmatpush1.msra.mxu0 0.0
    %336 = vmatprep.subr.mxu0 0.0
    %337 = vmatpush1.msra.mxu0 0.0
    %338 = vmatprep.subr.mxu0 0.0
    %339 = vmatpush1.msra.mxu0 0.0
    %340 = vmatprep.subr.mxu0 0.0
    %341 = vmatpush1.msra.mxu0 0.0
    %342 = vmatprep.subr.mxu0 0.0
    %343 = vmatpush1.msra.mxu0 0.0
    %344 = vmatprep.subr.mxu0 0.0
    %345 = vmatpush1.msra.mxu0 0.0
    %346 = vmatprep.subr.mxu0 0.0
    %347 = vmatpush1.msra.mxu0 0.0
    %348 = vmatprep.subr.mxu0 0.0
    %349 = vmatpush1.msra.mxu0 0.0
    %350 = vmatprep.subr.mxu0 0.0
    %351 = vmatpush1.msra.mxu0 0.0
    %352 = vmatprep.subr.mxu0 0.0
    %353 = vmatpush1.msra.mxu0 0.0
    %354 = vmatprep.subr.mxu0 0.0
    %355 = vmatpush1.msra.mxu0 0.0
    %356 = vmatprep.mubr.f32.mxu0 0.0
    %357 = vmatmul.mubr.f32.gmra.mrb[0].mxu0 %v196
    %v358 = vpop.f32.mrb[0].mxu0
    %v359 = vadd.f32 %v148, %v358
    %v360 = vpop.f32.mrb[0].mxu0
    %361 = vmatprep.mubr.f32.mxu0 0.0
    %362 = vmatmul.mubr.f32.gmra.mrb[0].mxu0 %v199
    %v363 = vpop.f32.mrb[0].mxu0
    %v364 = vadd.f32 %v153, %v363
    %v365 = vpop.f32.mrb[0].mxu0
    %366 = vmatprep.mubr.f32.mxu0 0.0
    %367 = vmatmul.mubr.f32.gmra.mrb[0].mxu0 %v202
    %v368 = vpop.f32.mrb[0].mxu0
    %v369 = vadd.f32 %v158, %v368
    %v370 = vpop.f32.mrb[0].mxu0
    %371 = vmatprep.mubr.f32.mxu0 0.0
    %372 = vmatmul.mubr.f32.gmra.mrb[0].mxu0 %v205
    %v373 = vpop.f32.mrb[0].mxu0
    %v374 = vadd.f32 %v163, %v373
    %v375 = vpop.f32.mrb[0].mxu0
    %376 = vdwg.mxu0
    %v377 = vsub.f32 %v359, %v274
    %v378 = vsub.f32 %v364, %v279
    %v379 = vsub.f32 %v369, %v284
    %v380 = vsub.f32 %v374, %v289
    %v381 = vmul.f32 %v377, %v377
    %v382 = vmul.f32 %v378, %v378
    %v383 = vmul.f32 %v379, %v379
    %v384 = vmul.f32 %v380, %v380
    %v385 = vadd.f32 %v381, %v382
    %v386 = vadd.f32 %v385, %v383
    %v387 = vadd.f32 %v386, %v384
    %v388 = vrot.slane %v387, 4
    %v389 = vadd.f32 %v387, %v388
    %v390 = vrot.slane %v389, 2
    %v391 = vadd.f32 %v389, %v390
    %v392 = vrot.slane %v391, 1
    %v393 = vadd.f32 %v391, %v392
    %v394 = vrsqrt.pop %v393
    %v395 = vmul.f32 %v393, %v394
    %vm396 = vcmp.eq.f32.partialorder %v393, inf
    %v397 = vsel %vm396, %v393, %v395
    %vm398 = vcmp.eq.f32.partialorder %v393, 0.0
    %v399 = vand.u32 %v393, 2147483648
    %v400 = vsel %vm398, %v399, %v397
    %401 = vst [vmem:[#allocation2] sm:$0x1] %v400
    // Predicated region
    $region14: #{tpu_custom_call.1} parent=1 // pred_check
      _
    $region15: #{tpu_custom_call.1} parent=1 // pred_check_branch
      %403 = sbr.rel (0) target = $region17
    $region16: #{tpu_custom_call.1} parent=1 // pred_region
      %s405 = ssub.s32 16, 16
      %406 = vsyncadd [#allocation3], %s405
      %s408 = sshll.u32 [#allocation2], 4
      %s409 = int_to_ptr.vmem [resolvable:$true] %s408
      %411 = dma.vmem_to_hbm [thread:$0]  %s409, 16, %s3, [#allocation3]
    $region17: #{tpu_custom_call.1} parent=1 // pred_fallthru
      _
    // Predicated region
    $region18: #{tpu_custom_call.1} parent=1 // pred_check
      _
    $region19: #{tpu_custom_call.1} parent=1 // pred_check_branch
      %413 = sbr.rel (0) target = $region21
    $region20: #{tpu_custom_call.1} parent=1 // pred_region
      %414 = dma.done [#allocation3], 16
    $region21: #{tpu_custom_call.1} parent=1 // pred_fallthru
      _
    %415 = vsyncpa [#allocation3], 1

</llo_original>
